<compile_context>
chip_gen: v6e
topology: v6e:2x2x1
jax: 0.10.0
libtpu: 0.0.40
codegen_flags: <defaults>
</compile_context>

<pallas_src>
import math

import jax
import jax.numpy as jnp
from jax.experimental import pallas as pl
from jax.experimental.pallas import tpu as pltpu

EPS = 1e-07
LOG_STD_MAX = 2.0
LOG_STD_MIN = -5.0
# Only used by get_log_density / get_deterministic_action in the reference module.
MEAN_MAX = 9.0
MEAN_MIN = -9.0

_HALF_LOG_2PI = 0.5 * math.log(2.0 * math.pi)
_LOG_2 = math.log(2.0)


def actor_kernel(x_ref, w1_ref, b1_ref, w2_ref, b2_ref, wh_ref, bh_ref,
                 noise_ref, action_ref, logp_ref, mu_ref, sigma_ref):
    # Feature-major: every activation is (features, batch_tile), batch on lanes.
    x = x_ref[...]                                                    # (num_in, T)

    # fc1 + relu ; fc2 + relu
    h1 = jnp.dot(w1_ref[...], x, preferred_element_type=jnp.float32) + b1_ref[...]
    h1 = jnp.maximum(h1, 0.0)                                         # (H, T)
    h2 = jnp.dot(w2_ref[...], h1, preferred_element_type=jnp.float32) + b2_ref[...]
    h2 = jnp.maximum(h2, 0.0)                                         # (H, T)

    # fused mu | log_sigma head: a single matmul, then slice the two halves
    head = jnp.dot(wh_ref[...], h2, preferred_element_type=jnp.float32) + bh_ref[...]
    A = mu_ref.shape[0]
    mu = head[:A, :]                                                  # (A, T)
    log_sigma = jnp.clip(head[A:, :], LOG_STD_MIN, LOG_STD_MAX)
    sigma = jnp.exp(log_sigma)

    # Normal(mu, sigma).rsample() with externally supplied standard-normal noise
    noise = noise_ref[...]                                            # (A, T)
    action_pre = mu + sigma * noise

    # Normal(mu, sigma).log_prob(action_pre) == -0.5*noise^2 - log_sigma - 0.5*log(2*pi)
    logp_elem = -0.5 * jnp.square(noise) - log_sigma - _HALF_LOG_2PI
    # tanh-squash correction: 2*(log(2) - a - softplus(-2a))   (exact, as in reference)
    corr = 2.0 * (_LOG_2 - action_pre - jax.nn.softplus(-2.0 * action_pre))
    logp_ref[...] = jnp.sum(logp_elem - corr, axis=0, keepdims=True)  # (1, T)

    action_ref[...] = jnp.tanh(action_pre)
    mu_ref[...] = mu
    sigma_ref[...] = sigma


def init_actor_params(key, num_state, num_action, num_agent, num_hidden):
    """PyTorch-style uniform(+-1/sqrt(fan_in)) init.

    Weights keep the native nn.Linear (out_features, in_features) layout, which is
    exactly what the feature-major kernel consumes; mu/sigma heads are concatenated."""
    num_in = num_state + num_agent
    keys = jax.random.split(key, 8)

    def lin(kw, kb, fan_in, fan_out):
        bound = 1.0 / math.sqrt(fan_in)
        w = jax.random.uniform(kw, (fan_out, fan_in), jnp.float32, -bound, bound)
        b = jax.random.uniform(kb, (fan_out, 1), jnp.float32, -bound, bound)
        return w, b

    w1, b1 = lin(keys[0], keys[1], num_in, num_hidden)
    w2, b2 = lin(keys[2], keys[3], num_hidden, num_hidden)
    wmu, bmu = lin(keys[4], keys[5], num_hidden, num_action)
    wsg, bsg = lin(keys[6], keys[7], num_hidden, num_action)
    wh = jnp.concatenate([wmu, wsg], axis=0)    # (2A, H)  fused head
    bh = jnp.concatenate([bmu, bsg], axis=0)    # (2A, 1)
    return dict(w1=w1, b1=b1, w2=w2, b2=b2, wh=wh, bh=bh)


def actor_forward(x, params, noise_key, *, batch_tile=1024):
    """Replicates Actor.forward. x: (B, num_state+num_agent).
    Returns (action, logp_pi, (mu, sigma)): (B, A), (B,), ((B, A), (B, A))."""
    B, num_in = x.shape
    H = params["w1"].shape[0]
    A2 = params["wh"].shape[0]
    A = A2 // 2

    # rsample() noise (kept external for reproducibility against the JAX RNG)
    noise = jax.random.normal(noise_key, (A, B), dtype=jnp.float32)
    x_t = jnp.transpose(x)          # (num_in, B): lane-dense feature-major layout

    tile = B if B <= batch_tile else batch_tile
    grid = (pl.cdiv(B, tile),)

    def batched(rows):    # batch-tiled operand; block index i along the lane axis
        return pl.BlockSpec((rows, tile), lambda i: (0, i))

    def resident(shape):  # weights / biases: constant index_map -> VMEM-resident
        return pl.BlockSpec(shape, lambda i: (0, 0))

    # advisory cost estimate for the XLA scheduler
    flops = 2 * B * (num_in * H + H * H + H * A2) + 16 * B * A
    transcendentals = 4 * B * A                       # exp, tanh, softplus(exp+log1p)
    bytes_accessed = 4 * (B * (num_in + A) + B * (3 * A + 1)
                          + H * (num_in + 1) + H * (H + 1) + A2 * (H + 1))

    action_t, logp_t, mu_t, sigma_t = pl.pallas_call(
        actor_kernel,
        grid=grid,
        out_shape=(
            jax.ShapeDtypeStruct((A, B), jnp.float32),   # tanh(action)
            jax.ShapeDtypeStruct((1, B), jnp.float32),   # logp_pi
            jax.ShapeDtypeStruct((A, B), jnp.float32),   # mu
            jax.ShapeDtypeStruct((A, B), jnp.float32),   # sigma
        ),
        in_specs=[
            batched(num_in),                             # x^T
            resident((H, num_in)), resident((H, 1)),     # fc1
            resident((H, H)), resident((H, 1)),          # fc2
            resident((A2, H)), resident((A2, 1)),        # fused mu|sigma head
            batched(A),                                  # noise
        ],
        out_specs=(batched(A), batched(1), batched(A), batched(A)),
        compiler_params=pltpu.CompilerParams(
            dimension_semantics=("parallel",),           # megacore sharding on v7x
            vmem_limit_bytes=32 * 1024 * 1024,           # safe on v5e/v6e/v7x
        ),
        cost_estimate=pl.CostEstimate(
            flops=flops, transcendentals=transcendentals,
            bytes_accessed=bytes_accessed),
    )(x_t, params["w1"], params["b1"], params["w2"], params["b2"],
      params["wh"], params["bh"], noise)

    # Back to the PyTorch (batch-major) convention; the Normal distribution object
    # is returned as its parameters (mu, sigma).
    return action_t.T, logp_t[0], (mu_t.T, sigma_t.T)


def actor_reference(x, params, noise):
    """Pure-JAX reference mirroring the PyTorch forward (noise is (A, B))."""
    h1 = jnp.maximum(x @ params["w1"].T + params["b1"][:, 0], 0.0)
    h2 = jnp.maximum(h1 @ params["w2"].T + params["b2"][:, 0], 0.0)
    head = h2 @ params["wh"].T + params["bh"][:, 0]
    A = noise.shape[0]
    mu = head[:, :A]
    log_sigma = jnp.clip(head[:, A:], LOG_STD_MIN, LOG_STD_MAX)
    sigma = jnp.exp(log_sigma)
    a_pre = mu + sigma * noise.T
    logp = jnp.sum(-0.5 * jnp.square(noise.T) - log_sigma - _HALF_LOG_2PI, axis=-1)
    logp = logp - jnp.sum(2.0 * (_LOG_2 - a_pre - jax.nn.softplus(-2.0 * a_pre)), axis=-1)
    return jnp.tanh(a_pre), logp, mu, sigma


if __name__ == "__main__":
    # Small shapes implied by the module: state=12, agent one-hot=4, hidden=32, action=8.
    num_state, num_agent, num_hidden, num_action = 12, 4, 32, 8
    key = jax.random.PRNGKey(0)
    k_param, k_in_small, k_in_big, k_noise = jax.random.split(key, 4)
    params = init_actor_params(k_param, num_state, num_action, num_agent, num_hidden)

    def check(batch, k_in):
        x = jax.random.normal(k_in, (batch, num_state + num_agent), dtype=jnp.float32)
        action, logp_pi, (mu, sigma) = actor_forward(x, params, k_noise)
        jax.block_until_ready((action, logp_pi, mu, sigma))
        assert action.shape == (batch, num_action)
        assert logp_pi.shape == (batch,)
        assert mu.shape == (batch, num_action) and sigma.shape == (batch, num_action)
        # numeric check against a pure-JAX reference using the identical noise
        noise = jax.random.normal(k_noise, (num_action, batch), dtype=jnp.float32)
        refs = actor_reference(x, params, noise)
        for got, want in zip((action, logp_pi, mu, sigma), refs):
            err = jnp.max(jnp.abs(got - want)) / (1.0 + jnp.max(jnp.abs(want)))
            assert float(err) < 2e-2, float(err)

    check(2, k_in_small)     # tiny module-implied shape (single grid step)
    check(2500, k_in_big)    # exercises the batch grid (3 tiles, ragged last tile)
    print("KERNEL_OK")
</pallas_src>

<mosaic_0001>
module attributes {stable_mosaic.version = 11 : i64} {
  func.func @actor_kernel(%arg0: i32, %arg1: memref<16x2xf32, #tpu.memory_space<vmem>>, %arg2: memref<32x16xf32, #tpu.memory_space<vmem>>, %arg3: memref<32x1xf32, #tpu.memory_space<vmem>>, %arg4: memref<32x32xf32, #tpu.memory_space<vmem>>, %arg5: memref<32x1xf32, #tpu.memory_space<vmem>>, %arg6: memref<16x32xf32, #tpu.memory_space<vmem>>, %arg7: memref<16x1xf32, #tpu.memory_space<vmem>>, %arg8: memref<8x2xf32, #tpu.memory_space<vmem>>, %arg9: memref<8x2xf32, #tpu.memory_space<vmem>>, %arg10: memref<1x2xf32, #tpu.memory_space<vmem>>, %arg11: memref<8x2xf32, #tpu.memory_space<vmem>>, %arg12: memref<8x2xf32, #tpu.memory_space<vmem>>) attributes {dimension_semantics = [#tpu.dimension_semantics<parallel>], iteration_bounds = array<i64: 1>, scalar_prefetch = 0 : i64, scratch_operands = 0 : i64, tpu.core_type = #tpu.core_type<tc>, window_params = [{transform_indices = @transform_0, window_bounds = array<i64: 16, 2>}, {pipeline_mode = #tpu.pipeline_mode<synchronous>, transform_indices = @transform_1, window_bounds = array<i64: 32, 16>}, {pipeline_mode = #tpu.pipeline_mode<synchronous>, transform_indices = @transform_2, window_bounds = array<i64: 32, 1>}, {pipeline_mode = #tpu.pipeline_mode<synchronous>, transform_indices = @transform_3, window_bounds = array<i64: 32, 32>}, {pipeline_mode = #tpu.pipeline_mode<synchronous>, transform_indices = @transform_4, window_bounds = array<i64: 32, 1>}, {pipeline_mode = #tpu.pipeline_mode<synchronous>, transform_indices = @transform_5, window_bounds = array<i64: 16, 32>}, {pipeline_mode = #tpu.pipeline_mode<synchronous>, transform_indices = @transform_6, window_bounds = array<i64: 16, 1>}, {transform_indices = @transform_7, window_bounds = array<i64: 8, 2>}, {transform_indices = @transform_8, window_bounds = array<i64: 8, 2>}, {transform_indices = @transform_9, window_bounds = array<i64: 1, 2>}, {transform_indices = @transform_10, window_bounds = array<i64: 8, 2>}, {transform_indices = @transform_11, window_bounds = array<i64: 8, 2>}]} {
    %c0 = arith.constant 0 : index
    %c0_0 = arith.constant 0 : index
    %0 = vector.load %arg1[%c0, %c0_0] : memref<16x2xf32, #tpu.memory_space<vmem>>, vector<16x2xf32>
    %c0_1 = arith.constant 0 : index
    %c0_2 = arith.constant 0 : index
    %1 = vector.load %arg2[%c0_1, %c0_2] : memref<32x16xf32, #tpu.memory_space<vmem>>, vector<32x16xf32>
    %cst = arith.constant dense<0.000000e+00> : vector<32x2xf32>
    %2 = tpu.matmul %1, %0, %cst {dimension_numbers = #tpu.dot_dimension_numbers<[1], [0], [0], [1], [0, 0, 1, 1], [], []>} : vector<32x16xf32>, vector<16x2xf32>, vector<32x2xf32> -> vector<32x2xf32>
    %c0_3 = arith.constant 0 : index
    %c0_4 = arith.constant 0 : index
    %3 = vector.load %arg3[%c0_3, %c0_4] : memref<32x1xf32, #tpu.memory_space<vmem>>, vector<32x1xf32>
    %4 = vector.broadcast %3 : vector<32x1xf32> to vector<32x2xf32>
    %5 = arith.addf %2, %4 : vector<32x2xf32>
    %cst_5 = arith.constant 0.000000e+00 : f32
    %6 = vector.broadcast %cst_5 : f32 to vector<32x2xf32>
    %7 = arith.maximumf %5, %6 : vector<32x2xf32>
    %c0_6 = arith.constant 0 : index
    %c0_7 = arith.constant 0 : index
    %8 = vector.load %arg4[%c0_6, %c0_7] : memref<32x32xf32, #tpu.memory_space<vmem>>, vector<32x32xf32>
    %cst_8 = arith.constant dense<0.000000e+00> : vector<32x2xf32>
    %9 = tpu.matmul %8, %7, %cst_8 {dimension_numbers = #tpu.dot_dimension_numbers<[1], [0], [0], [1], [0, 0, 1, 1], [], []>} : vector<32x32xf32>, vector<32x2xf32>, vector<32x2xf32> -> vector<32x2xf32>
    %c0_9 = arith.constant 0 : index
    %c0_10 = arith.constant 0 : index
    %10 = vector.load %arg5[%c0_9, %c0_10] : memref<32x1xf32, #tpu.memory_space<vmem>>, vector<32x1xf32>
    %11 = vector.broadcast %10 : vector<32x1xf32> to vector<32x2xf32>
    %12 = arith.addf %9, %11 : vector<32x2xf32>
    %cst_11 = arith.constant 0.000000e+00 : f32
    %13 = vector.broadcast %cst_11 : f32 to vector<32x2xf32>
    %14 = arith.maximumf %12, %13 : vector<32x2xf32>
    %c0_12 = arith.constant 0 : index
    %c0_13 = arith.constant 0 : index
    %15 = vector.load %arg6[%c0_12, %c0_13] : memref<16x32xf32, #tpu.memory_space<vmem>>, vector<16x32xf32>
    %cst_14 = arith.constant dense<0.000000e+00> : vector<16x2xf32>
    %16 = tpu.matmul %15, %14, %cst_14 {dimension_numbers = #tpu.dot_dimension_numbers<[1], [0], [0], [1], [0, 0, 1, 1], [], []>} : vector<16x32xf32>, vector<32x2xf32>, vector<16x2xf32> -> vector<16x2xf32>
    %c0_15 = arith.constant 0 : index
    %c0_16 = arith.constant 0 : index
    %17 = vector.load %arg7[%c0_15, %c0_16] : memref<16x1xf32, #tpu.memory_space<vmem>>, vector<16x1xf32>
    %18 = vector.broadcast %17 : vector<16x1xf32> to vector<16x2xf32>
    %19 = arith.addf %16, %18 : vector<16x2xf32>
    %20 = vector.extract_strided_slice %19 {offsets = [0, 0], sizes = [8, 2], strides = [1, 1]} : vector<16x2xf32> to vector<8x2xf32>
    %21 = vector.extract_strided_slice %19 {offsets = [8, 0], sizes = [8, 2], strides = [1, 1]} : vector<16x2xf32> to vector<8x2xf32>
    %cst_17 = arith.constant -5.000000e+00 : f32
    %cst_18 = arith.constant 2.000000e+00 : f32
    %22 = vector.broadcast %cst_17 : f32 to vector<8x2xf32>
    %23 = arith.maximumf %22, %21 : vector<8x2xf32>
    %24 = vector.broadcast %cst_18 : f32 to vector<8x2xf32>
    %25 = arith.minimumf %24, %23 : vector<8x2xf32>
    %26 = math.exp %25 : vector<8x2xf32>
    %c0_19 = arith.constant 0 : index
    %c0_20 = arith.constant 0 : index
    %27 = vector.load %arg8[%c0_19, %c0_20] : memref<8x2xf32, #tpu.memory_space<vmem>>, vector<8x2xf32>
    %28 = arith.mulf %26, %27 : vector<8x2xf32>
    %29 = arith.addf %20, %28 : vector<8x2xf32>
    %30 = arith.mulf %27, %27 : vector<8x2xf32>
    %cst_21 = arith.constant -5.000000e-01 : f32
    %31 = vector.broadcast %cst_21 : f32 to vector<8x2xf32>
    %32 = arith.mulf %31, %30 : vector<8x2xf32>
    %33 = arith.subf %32, %25 : vector<8x2xf32>
    %cst_22 = arith.constant 0.918938517 : f32
    %34 = vector.broadcast %cst_22 : f32 to vector<8x2xf32>
    %35 = arith.subf %33, %34 : vector<8x2xf32>
    %cst_23 = arith.constant 0.693147182 : f32
    %36 = vector.broadcast %cst_23 : f32 to vector<8x2xf32>
    %37 = arith.subf %36, %29 : vector<8x2xf32>
    %cst_24 = arith.constant -2.000000e+00 : f32
    %38 = vector.broadcast %cst_24 : f32 to vector<8x2xf32>
    %39 = arith.mulf %38, %29 : vector<8x2xf32>
    %cst_25 = arith.constant 0.000000e+00 : f32
    %40 = vector.broadcast %cst_25 : f32 to vector<8x2xf32>
    %41 = arith.maximumf %39, %40 : vector<8x2xf32>
    %42 = vector.broadcast %cst_25 : f32 to vector<8x2xf32>
    %43 = arith.subf %39, %42 : vector<8x2xf32>
    %44 = arith.cmpf one, %43, %43 : vector<8x2xf32>
    %45 = vector.broadcast %cst_25 : f32 to vector<8x2xf32>
    %46 = arith.addf %39, %45 : vector<8x2xf32>
    %47 = math.absf %43 : vector<8x2xf32>
    %cst_26 = arith.constant 0.000000e+00 : f32
    %48 = vector.broadcast %cst_26 : f32 to vector<8x2xf32>
    %49 = arith.subf %48, %47 : vector<8x2xf32>
    %50 = math.exp %49 : vector<8x2xf32>
    %51 = math.log1p %50 : vector<8x2xf32>
    %52 = arith.addf %41, %51 : vector<8x2xf32>
    %53 = arith.select %44, %46, %52 : vector<8x2xi1>, vector<8x2xf32>
    %54 = arith.subf %37, %53 : vector<8x2xf32>
    %cst_27 = arith.constant 2.000000e+00 : f32
    %55 = vector.broadcast %cst_27 : f32 to vector<8x2xf32>
    %56 = arith.mulf %55, %54 : vector<8x2xf32>
    %57 = arith.subf %35, %56 : vector<8x2xf32>
    %cst_28 = arith.constant dense<0.000000e+00> : vector<2xf32>
    %58 = vector.multi_reduction <add>, %57, %cst_28 [0] : vector<8x2xf32> to vector<2xf32>
    %59 = vector.shape_cast %58 : vector<2xf32> to vector<1x2xf32>
    %c0_29 = arith.constant 0 : index
    %c0_30 = arith.constant 0 : index
    %60 = vector.load %arg10[%c0_29, %c0_30] : memref<1x2xf32, #tpu.memory_space<vmem>>, vector<1x2xf32>
    tpu.vector_store %arg10[%c0_29, %c0_30], %59 {strides = array<i32>} : memref<1x2xf32, #tpu.memory_space<vmem>>, vector<1x2xf32>,
    %61 = math.tanh %29 : vector<8x2xf32>
    %c0_31 = arith.constant 0 : index
    %c0_32 = arith.constant 0 : index
    %62 = vector.load %arg9[%c0_31, %c0_32] : memref<8x2xf32, #tpu.memory_space<vmem>>, vector<8x2xf32>
    tpu.vector_store %arg9[%c0_31, %c0_32], %61 {strides = array<i32>} : memref<8x2xf32, #tpu.memory_space<vmem>>, vector<8x2xf32>,
    %c0_33 = arith.constant 0 : index
    %c0_34 = arith.constant 0 : index
    %63 = vector.load %arg11[%c0_33, %c0_34] : memref<8x2xf32, #tpu.memory_space<vmem>>, vector<8x2xf32>
    tpu.vector_store %arg11[%c0_33, %c0_34], %20 {strides = array<i32>} : memref<8x2xf32, #tpu.memory_space<vmem>>, vector<8x2xf32>,
    %c0_35 = arith.constant 0 : index
    %c0_36 = arith.constant 0 : index
    %64 = vector.load %arg12[%c0_35, %c0_36] : memref<8x2xf32, #tpu.memory_space<vmem>>, vector<8x2xf32>
    tpu.vector_store %arg12[%c0_35, %c0_36], %26 {strides = array<i32>} : memref<8x2xf32, #tpu.memory_space<vmem>>, vector<8x2xf32>,
    return
  }
  func.func @transform_0(%arg0: i32) -> (i32, i32) {
    %c0_i32 = arith.constant 0 : i32
    %c0_i32_0 = arith.constant 0 : i32
    return %c0_i32, %arg0 : i32, i32
  }
  func.func @transform_1(%arg0: i32) -> (i32, i32) {
    %c0_i32 = arith.constant 0 : i32
    %c0_i32_0 = arith.constant 0 : i32
    %c0_i32_1 = arith.constant 0 : i32
    return %c0_i32, %c0_i32_0 : i32, i32
  }
  func.func @transform_2(%arg0: i32) -> (i32, i32) {
    %c0_i32 = arith.constant 0 : i32
    %c0_i32_0 = arith.constant 0 : i32
    %c0_i32_1 = arith.constant 0 : i32
    return %c0_i32, %c0_i32_0 : i32, i32
  }
  func.func @transform_3(%arg0: i32) -> (i32, i32) {
    %c0_i32 = arith.constant 0 : i32
    %c0_i32_0 = arith.constant 0 : i32
    %c0_i32_1 = arith.constant 0 : i32
    return %c0_i32, %c0_i32_0 : i32, i32
  }
  func.func @transform_4(%arg0: i32) -> (i32, i32) {
    %c0_i32 = arith.constant 0 : i32
    %c0_i32_0 = arith.constant 0 : i32
    %c0_i32_1 = arith.constant 0 : i32
    return %c0_i32, %c0_i32_0 : i32, i32
  }
  func.func @transform_5(%arg0: i32) -> (i32, i32) {
    %c0_i32 = arith.constant 0 : i32
    %c0_i32_0 = arith.constant 0 : i32
    %c0_i32_1 = arith.constant 0 : i32
    return %c0_i32, %c0_i32_0 : i32, i32
  }
  func.func @transform_6(%arg0: i32) -> (i32, i32) {
    %c0_i32 = arith.constant 0 : i32
    %c0_i32_0 = arith.constant 0 : i32
    %c0_i32_1 = arith.constant 0 : i32
    return %c0_i32, %c0_i32_0 : i32, i32
  }
  func.func @transform_7(%arg0: i32) -> (i32, i32) {
    %c0_i32 = arith.constant 0 : i32
    %c0_i32_0 = arith.constant 0 : i32
    return %c0_i32, %arg0 : i32, i32
  }
  func.func @transform_8(%arg0: i32) -> (i32, i32) {
    %c0_i32 = arith.constant 0 : i32
    %c0_i32_0 = arith.constant 0 : i32
    return %c0_i32, %arg0 : i32, i32
  }
  func.func @transform_9(%arg0: i32) -> (i32, i32) {
    %c0_i32 = arith.constant 0 : i32
    %c0_i32_0 = arith.constant 0 : i32
    return %c0_i32, %arg0 : i32, i32
  }
  func.func @transform_10(%arg0: i32) -> (i32, i32) {
    %c0_i32 = arith.constant 0 : i32
    %c0_i32_0 = arith.constant 0 : i32
    return %c0_i32, %arg0 : i32, i32
  }
  func.func @transform_11(%arg0: i32) -> (i32, i32) {
    %c0_i32 = arith.constant 0 : i32
    %c0_i32_0 = arith.constant 0 : i32
    return %c0_i32, %arg0 : i32, i32
  }
}

</mosaic_0001>

<llo_original>
// kernel: tpu_custom_call.1
$region0: #{tpu_custom_call.1}
  #allocation0 [shape = 'u32[]', space=smem, size = 0x4, offset = 0x4, fixed_abs, tag = 'smem constant byte address 0x4 - core index']
  #allocation1 [shape = 'u32[144,128]{1,0:T(1,128)}', space=vmem, size = 0x12000, scoped, tag = 'internal scratch']
  %s0 = inlined_call_operand.vmem [shape: f32[16,2], index: 0, kind: input, shape index: {}]
  %s1 = inlined_call_operand.vmem [shape: f32[32,16], index: 1, kind: input, shape index: {}]
  %s2 = inlined_call_operand.vmem [shape: f32[32,1], index: 2, kind: input, shape index: {}]
  %s3 = inlined_call_operand.vmem [shape: f32[32,32], index: 3, kind: input, shape index: {}]
  %s4 = inlined_call_operand.vmem [shape: f32[32,1], index: 4, kind: input, shape index: {}]
  %s5 = inlined_call_operand.vmem [shape: f32[16,32], index: 5, kind: input, shape index: {}]
  %s6 = inlined_call_operand.vmem [shape: f32[16,1], index: 6, kind: input, shape index: {}]
  %s7 = inlined_call_operand.vmem [shape: f32[8,2], index: 7, kind: input, shape index: {}]
  %s8 = inlined_call_operand.vmem [shape: f32[8,2], index: 8, kind: output, shape index: {0}]
  %s9 = inlined_call_operand.hbm [shape: f32[1,2], index: 9, kind: output, shape index: {1}]
  %s10 = inlined_call_operand.vmem [shape: f32[8,2], index: 10, kind: output, shape index: {2}]
  %s11 = inlined_call_operand.vmem [shape: f32[8,2], index: 11, kind: output, shape index: {3}]
  %12 = xla_tuple %s8, %s9, %s10, %s11
  %s13 = sld [smem:[#allocation0]]
  $region66: #{tpu_custom_call.1} parent=0
    _
  %s15 = ssub.s32 1, %s13
  %s16 = scalar_select 0, %s15, %s13
  $region1: #{tpu_custom_call.1} parent=0
    #allocation2 [shape = 'u8[512]{0}', space=vmem, size = 0x400, scoped, tag = 'output window, operand 1, single buffered']
    #allocation3 [shape = 's32[1]{0}', space=sflag, size = 0x4, scoped, tag = 'scoped memory for tpu_custom_call.1']
    %17 = vsyncpa [#allocation3], 0
    // Predicated region
    $region2: #{tpu_custom_call.1} parent=1 // pred_check
      _
    $region3: #{tpu_custom_call.1} parent=1 // pred_check_branch
      %19 = sbr.rel (0) target = $region5
    $region4: #{tpu_custom_call.1} parent=1 // pred_region
      _
    $region5: #{tpu_custom_call.1} parent=1 // pred_fallthru
      _
    // Predicated region
    $region6: #{tpu_custom_call.1} parent=1 // pred_check
      _
    $region7: #{tpu_custom_call.1} parent=1 // pred_check_branch
      %21 = sbr.rel (0) target = $region9
    $region8: #{tpu_custom_call.1} parent=1 // pred_region
      _
    $region9: #{tpu_custom_call.1} parent=1 // pred_fallthru
      _
    // Predicated region
    $region10: #{tpu_custom_call.1} parent=1 // pred_check
      _
    $region11: #{tpu_custom_call.1} parent=1 // pred_check_branch
      %23 = sbr.rel (0) target = $region13
    $region12: #{tpu_custom_call.1} parent=1 // pred_region
      _
    $region13: #{tpu_custom_call.1} parent=1 // pred_fallthru
      _
    // Predicated region
    $region14: #{tpu_custom_call.1} parent=1 // pred_check
      _
    $region15: #{tpu_custom_call.1} parent=1 // pred_check_branch
      %25 = sbr.rel (0) target = $region17
    $region16: #{tpu_custom_call.1} parent=1 // pred_region
      _
    $region17: #{tpu_custom_call.1} parent=1 // pred_fallthru
      _
    // Predicated region
    $region18: #{tpu_custom_call.1} parent=1 // pred_check
      _
    $region19: #{tpu_custom_call.1} parent=1 // pred_check_branch
      %27 = sbr.rel (0) target = $region21
    $region20: #{tpu_custom_call.1} parent=1 // pred_region
      _
    $region21: #{tpu_custom_call.1} parent=1 // pred_fallthru
      _
    // Predicated region
    $region22: #{tpu_custom_call.1} parent=1 // pred_check
      _
    $region23: #{tpu_custom_call.1} parent=1 // pred_check_branch
      %29 = sbr.rel (0) target = $region25
    $region24: #{tpu_custom_call.1} parent=1 // pred_region
      _
    $region25: #{tpu_custom_call.1} parent=1 // pred_fallthru
      _
    // Predicated region
    $region26: #{tpu_custom_call.1} parent=1 // pred_check
      _
    $region27: #{tpu_custom_call.1} parent=1 // pred_check_branch
      %31 = sbr.rel (0) target = $region29
    $region28: #{tpu_custom_call.1} parent=1 // pred_region
      _
    $region29: #{tpu_custom_call.1} parent=1 // pred_fallthru
      _
    // Predicated region
    $region30: #{tpu_custom_call.1} parent=1 // pred_check
      _
    $region31: #{tpu_custom_call.1} parent=1 // pred_check_branch
      %33 = sbr.rel (0) target = $region33
    $region32: #{tpu_custom_call.1} parent=1 // pred_region
      _
    $region33: #{tpu_custom_call.1} parent=1 // pred_fallthru
      _
    %v34 = vld [vmem:[%s0] sm:$0xff]
    %v35 = vld [vmem:[%s0 + $0x8] sm:$0xff]
    %v36 = vld [vmem:[%s1] sm:$0xff]
    %v37 = vld [vmem:[%s1 + $0x8] sm:$0xff]
    %v38 = vld [vmem:[%s1 + $0x10] sm:$0xff]
    %v39 = vld [vmem:[%s1 + $0x18] sm:$0xff]
    %v40 = vld [vmem:[%s2] sm:$0xff]
    %v41 = vld [vmem:[%s2 + $0x8] sm:$0xff]
    %v42 = vld [vmem:[%s2 + $0x10] sm:$0xff]
    %v43 = vld [vmem:[%s2 + $0x18] sm:$0xff]
    %45 = vset.pattern.permute.xlu0 0
    %46 = vperm.xlu0 %45, %v40
    %v47 = vpop.permute.xlu0 %46
    %50 = vset.pattern.permute.xlu0 0
    %51 = vperm.xlu0 %50, %v41
    %v52 = vpop.permute.xlu0 %51
    %55 = vset.pattern.permute.xlu0 0
    %56 = vperm.xlu0 %55, %v42
    %v57 = vpop.permute.xlu0 %56
    %60 = vset.pattern.permute.xlu0 0
    %61 = vperm.xlu0 %60, %v43
    %v62 = vpop.permute.xlu0 %61
    %vm64 = vcmask 130048
    %v66 = vsel %vm64, %v36, 0
    %v69 = vsel %vm64, %v37, 0
    %v72 = vsel %vm64, %v38, 0
    %v75 = vsel %vm64, %v39, 0
    %77 = vmatprep.subr.mxu0 0.0
    %78 = vmatpush1.msra.mxu0 0.0
    %79 = vmatprep.subr.mxu0 0.0
    %80 = vmatpush1.msra.mxu0 0.0
    %81 = vmatprep.subr.mxu0 0.0
    %82 = vmatpush1.msra.mxu0 0.0
    %83 = vmatprep.subr.mxu0 0.0
    %84 = vmatpush1.msra.mxu0 0.0
    %85 = vmatprep.subr.mxu0 0.0
    %86 = vmatpush1.msra.mxu0 0.0
    %87 = vmatprep.subr.mxu0 0.0
    %88 = vmatpush1.msra.mxu0 0.0
    %89 = vmatprep.subr.mxu0 0.0
    %90 = vmatpush1.msra.mxu0 0.0
    %91 = vmatprep.subr.mxu0 0.0
    %92 = vmatpush1.msra.mxu0 0.0
    %93 = vmatprep.subr.mxu0 0.0
    %94 = vmatpush1.msra.mxu0 0.0
    %95 = vmatprep.subr.mxu0 0.0
    %96 = vmatpush1.msra.mxu0 0.0
    %97 = vmatprep.subr.mxu0 0.0
    %98 = vmatpush1.msra.mxu0 0.0
    %99 = vmatprep.subr.mxu0 0.0
    %100 = vmatpush1.msra.mxu0 0.0
    %101 = vmatprep.subr.mxu0 0.0
    %102 = vmatpush1.msra.mxu0 0.0
    %103 = vmatprep.subr.mxu0 0.0
    %104 = vmatpush1.msra.mxu0 0.0
    %105 = vmatprep.subr.mxu0 0.0
    %106 = vmatpush1.msra.mxu0 %v35
    %107 = vmatprep.subr.mxu0 0.0
    %108 = vmatpush1.msra.mxu0 %v34
    %109 = vmatprep.subr.mxu0 0.0
    %110 = vmatpush2.msra.mxu0 0.0
    %111 = vmatprep.subr.mxu0 0.0
    %112 = vmatpush2.msra.mxu0 0.0
    %113 = vmatprep.subr.mxu0 0.0
    %114 = vmatpush2.msra.mxu0 0.0
    %115 = vmatprep.subr.mxu0 0.0
    %116 = vmatpush2.msra.mxu0 0.0
    %117 = vmatprep.subr.mxu0 0.0
    %118 = vmatpush2.msra.mxu0 0.0
    %119 = vmatprep.subr.mxu0 0.0
    %120 = vmatpush2.msra.mxu0 0.0
    %121 = vmatprep.subr.mxu0 0.0
    %122 = vmatpush2.msra.mxu0 0.0
    %123 = vmatprep.subr.mxu0 0.0
    %124 = vmatpush2.msra.mxu0 0.0
    %125 = vmatprep.subr.mxu0 0.0
    %126 = vmatpush2.msra.mxu0 0.0
    %127 = vmatprep.subr.mxu0 0.0
    %128 = vmatpush2.msra.mxu0 0.0
    %129 = vmatprep.subr.mxu0 0.0
    %130 = vmatpush2.msra.mxu0 0.0
    %131 = vmatprep.subr.mxu0 0.0
    %132 = vmatpush2.msra.mxu0 0.0
    %133 = vmatprep.subr.mxu0 0.0
    %134 = vmatpush2.msra.mxu0 0.0
    %135 = vmatprep.subr.mxu0 0.0
    %136 = vmatpush2.msra.mxu0 0.0
    %137 = vmatprep.subr.mxu0 0.0
    %138 = vmatpush2.msra.mxu0 0.0
    %139 = vmatprep.subr.mxu0 0.0
    %140 = vmatpush2.msra.mxu0 0.0
    %141 = vmatprep.mubr.f32.mxu0 0.0
    %142 = vmatmul.mubr.f32.gmra.mxu0 %v66
    %v143 = vpop.f32.mrf.mxu0
    %v144 = vadd.f32 %v47, %v143
    %v145 = vpop.f32.mrf.mxu0
    %146 = vmatprep.mubr.f32.mxu0 0.0
    %147 = vmatmul.mubr.f32.gmra.mxu0 %v69
    %v148 = vpop.f32.mrf.mxu0
    %v149 = vadd.f32 %v52, %v148
    %v150 = vpop.f32.mrf.mxu0
    %151 = vmatprep.mubr.f32.mxu0 0.0
    %152 = vmatmul.mubr.f32.gmra.mxu0 %v72
    %v153 = vpop.f32.mrf.mxu0
    %v154 = vadd.f32 %v57, %v153
    %v155 = vpop.f32.mrf.mxu0
    %156 = vmatprep.mubr.f32.mxu0 0.0
    %157 = vmatmul.mubr.f32.gmra.mxu0 %v75
    %v158 = vpop.f32.mrf.mxu0
    %v159 = vadd.f32 %v62, %v158
    %v160 = vpop.f32.mrf.mxu0
    %161 = vdwg.mxu0
    %v162 = vmax.f32 %v144, 0.0
    %v163 = vmax.f32 %v149, 0.0
    %v164 = vmax.f32 %v154, 0.0
    %v165 = vmax.f32 %v159, 0.0
    %v166 = vld [vmem:[%s3] sm:$0xff]
    %v167 = vld [vmem:[%s3 + $0x8] sm:$0xff]
    %v168 = vld [vmem:[%s3 + $0x10] sm:$0xff]
    %v169 = vld [vmem:[%s3 + $0x18] sm:$0xff]
    %v170 = vld [vmem:[%s4] sm:$0xff]
    %v171 = vld [vmem:[%s4 + $0x8] sm:$0xff]
    %v172 = vld [vmem:[%s4 + $0x10] sm:$0xff]
    %v173 = vld [vmem:[%s4 + $0x18] sm:$0xff]
    %175 = vset.pattern.permute.xlu0 0
    %176 = vperm.xlu0 %175, %v170
    %v177 = vpop.permute.xlu0 %176
    %180 = vset.pattern.permute.xlu0 0
    %181 = vperm.xlu0 %180, %v171
    %v182 = vpop.permute.xlu0 %181
    %185 = vset.pattern.permute.xlu0 0
    %186 = vperm.xlu0 %185, %v172
    %v187 = vpop.permute.xlu0 %186
    %190 = vset.pattern.permute.xlu0 0
    %191 = vperm.xlu0 %190, %v173
    %v192 = vpop.permute.xlu0 %191
    %vm194 = vcmask 261120
    %v196 = vsel %vm194, %v166, 0
    %v199 = vsel %vm194, %v167, 0
    %v202 = vsel %vm194, %v168, 0
    %v205 = vsel %vm194, %v169, 0
    %207 = vmatprep.subr.mxu0 0.0
    %208 = vmatpush1.msra.mxu0 0.0
    %209 = vmatprep.subr.mxu0 0.0
    %210 = vmatpush1.msra.mxu0 0.0
    %211 = vmatprep.subr.mxu0 0.0
    %212 = vmatpush1.msra.mxu0 0.0
    %213 = vmatprep.subr.mxu0 0.0
    %214 = vmatpush1.msra.mxu0 0.0
    %215 = vmatprep.subr.mxu0 0.0
    %216 = vmatpush1.msra.mxu0 0.0
    %217 = vmatprep.subr.mxu0 0.0
    %218 = vmatpush1.msra.mxu0 0.0
    %219 = vmatprep.subr.mxu0 0.0
    %220 = vmatpush1.msra.mxu0 0.0
    %221 = vmatprep.subr.mxu0 0.0
    %222 = vmatpush1.msra.mxu0 0.0
    %223 = vmatprep.subr.mxu0 0.0
    %224 = vmatpush1.msra.mxu0 0.0
    %225 = vmatprep.subr.mxu0 0.0
    %226 = vmatpush1.msra.mxu0 0.0
    %227 = vmatprep.subr.mxu0 0.0
    %228 = vmatpush1.msra.mxu0 0.0
    %229 = vmatprep.subr.mxu0 0.0
    %230 = vmatpush1.msra.mxu0 0.0
    %231 = vmatprep.subr.mxu0 0.0
    %232 = vmatpush1.msra.mxu0 %v165
    %233 = vmatprep.subr.mxu0 0.0
    %234 = vmatpush1.msra.mxu0 %v164
    %235 = vmatprep.subr.mxu0 0.0
    %236 = vmatpush1.msra.mxu0 %v163
    %237 = vmatprep.subr.mxu0 0.0
    %238 = vmatpush1.msra.mxu0 %v162
    %239 = vmatprep.subr.mxu0 0.0
    %240 = vmatpush2.msra.mxu0 0.0
    %241 = vmatprep.subr.mxu0 0.0
    %242 = vmatpush2.msra.mxu0 0.0
    %243 = vmatprep.subr.mxu0 0.0
    %244 = vmatpush2.msra.mxu0 0.0
    %245 = vmatprep.subr.mxu0 0.0
    %246 = vmatpush2.msra.mxu0 0.0
    %247 = vmatprep.subr.mxu0 0.0
    %248 = vmatpush2.msra.mxu0 0.0
    %249 = vmatprep.subr.mxu0 0.0
    %250 = vmatpush2.msra.mxu0 0.0
    %251 = vmatprep.subr.mxu0 0.0
    %252 = vmatpush2.msra.mxu0 0.0
    %253 = vmatprep.subr.mxu0 0.0
    %254 = vmatpush2.msra.mxu0 0.0
    %255 = vmatprep.subr.mxu0 0.0
    %256 = vmatpush2.msra.mxu0 0.0
    %257 = vmatprep.subr.mxu0 0.0
    %258 = vmatpush2.msra.mxu0 0.0
    %259 = vmatprep.subr.mxu0 0.0
    %260 = vmatpush2.msra.mxu0 0.0
    %261 = vmatprep.subr.mxu0 0.0
    %262 = vmatpush2.msra.mxu0 0.0
    %263 = vmatprep.subr.mxu0 0.0
    %264 = vmatpush2.msra.mxu0 0.0
    %265 = vmatprep.subr.mxu0 0.0
    %266 = vmatpush2.msra.mxu0 0.0
    %267 = vmatprep.subr.mxu0 0.0
    %268 = vmatpush2.msra.mxu0 0.0
    %269 = vmatprep.subr.mxu0 0.0
    %270 = vmatpush2.msra.mxu0 0.0
    %271 = vmatprep.mubr.f32.mxu0 0.0
    %272 = vmatmul.mubr.f32.gmra.mxu0 %v196
    %v273 = vpop.f32.mrf.mxu0
    %v274 = vadd.f32 %v177, %v273
    %v275 = vpop.f32.mrf.mxu0
    %276 = vmatprep.mubr.f32.mxu0 0.0
    %277 = vmatmul.mubr.f32.gmra.mxu0 %v199
    %v278 = vpop.f32.mrf.mxu0
    %v279 = vadd.f32 %v182, %v278
    %v280 = vpop.f32.mrf.mxu0
    %281 = vmatprep.mubr.f32.mxu0 0.0
    %282 = vmatmul.mubr.f32.gmra.mxu0 %v202
    %v283 = vpop.f32.mrf.mxu0
    %v284 = vadd.f32 %v187, %v283
    %v285 = vpop.f32.mrf.mxu0
    %286 = vmatprep.mubr.f32.mxu0 0.0
    %287 = vmatmul.mubr.f32.gmra.mxu0 %v205
    %v288 = vpop.f32.mrf.mxu0
    %v289 = vadd.f32 %v192, %v288
    %v290 = vpop.f32.mrf.mxu0
    %291 = vdwg.mxu0
    %v292 = vmax.f32 %v274, 0.0
    %v293 = vmax.f32 %v279, 0.0
    %v294 = vmax.f32 %v284, 0.0
    %v295 = vmax.f32 %v289, 0.0
    %v296 = vld [vmem:[%s5] sm:$0xff]
    %v297 = vld [vmem:[%s5 + $0x8] sm:$0xff]
    %v298 = vld [vmem:[%s6] sm:$0xff]
    %v299 = vld [vmem:[%s6 + $0x8] sm:$0xff]
    %301 = vset.pattern.permute.xlu0 0
    %302 = vperm.xlu0 %301, %v298
    %v303 = vpop.permute.xlu0 %302
    %306 = vset.pattern.permute.xlu0 0
    %307 = vperm.xlu0 %306, %v299
    %v308 = vpop.permute.xlu0 %307
    %v311 = vsel %vm194, %v296, 0
    %v314 = vsel %vm194, %v297, 0
    %316 = vmatprep.subr.mxu0 0.0
    %317 = vmatpush1.msra.mxu0 0.0
    %318 = vmatprep.subr.mxu0 0.0
    %319 = vmatpush1.msra.mxu0 0.0
    %320 = vmatprep.subr.mxu0 0.0
    %321 = vmatpush1.msra.mxu0 0.0
    %322 = vmatprep.subr.mxu0 0.0
    %323 = vmatpush1.msra.mxu0 0.0
    %324 = vmatprep.subr.mxu0 0.0
    %325 = vmatpush1.msra.mxu0 0.0
    %326 = vmatprep.subr.mxu0 0.0
    %327 = vmatpush1.msra.mxu0 0.0
    %328 = vmatprep.subr.mxu0 0.0
    %329 = vmatpush1.msra.mxu0 0.0
    %330 = vmatprep.subr.mxu0 0.0
    %331 = vmatpush1.msra.mxu0 0.0
    %332 = vmatprep.subr.mxu0 0.0
    %333 = vmatpush1.msra.mxu0 0.0
    %334 = vmatprep.subr.mxu0 0.0
    %335 = vmatpush1.msra.mxu0 0.0
    %336 = vmatprep.subr.mxu0 0.0
    %337 = vmatpush1.msra.mxu0 0.0
    %338 = vmatprep.subr.mxu0 0.0
    %339 = vmatpush1.msra.mxu0 0.0
    %340 = vmatprep.subr.mxu0 0.0
    %341 = vmatpush1.msra.mxu0 %v295
    %342 = vmatprep.subr.mxu0 0.0
    %343 = vmatpush1.msra.mxu0 %v294
    %344 = vmatprep.subr.mxu0 0.0
    %345 = vmatpush1.msra.mxu0 %v293
    %346 = vmatprep.subr.mxu0 0.0
    %347 = vmatpush1.msra.mxu0 %v292
    %348 = vmatprep.subr.mxu0 0.0
    %349 = vmatpush2.msra.mxu0 0.0
    %350 = vmatprep.subr.mxu0 0.0
    %351 = vmatpush2.msra.mxu0 0.0
    %352 = vmatprep.subr.mxu0 0.0
    %353 = vmatpush2.msra.mxu0 0.0
    %354 = vmatprep.subr.mxu0 0.0
    %355 = vmatpush2.msra.mxu0 0.0
    %356 = vmatprep.subr.mxu0 0.0
    %357 = vmatpush2.msra.mxu0 0.0
    %358 = vmatprep.subr.mxu0 0.0
    %359 = vmatpush2.msra.mxu0 0.0
    %360 = vmatprep.subr.mxu0 0.0
    %361 = vmatpush2.msra.mxu0 0.0
    %362 = vmatprep.subr.mxu0 0.0
    %363 = vmatpush2.msra.mxu0 0.0
    %364 = vmatprep.subr.mxu0 0.0
    %365 = vmatpush2.msra.mxu0 0.0
    %366 = vmatprep.subr.mxu0 0.0
    %367 = vmatpush2.msra.mxu0 0.0
    %368 = vmatprep.subr.mxu0 0.0
    %369 = vmatpush2.msra.mxu0 0.0
    %370 = vmatprep.subr.mxu0 0.0
    %371 = vmatpush2.msra.mxu0 0.0
    %372 = vmatprep.subr.mxu0 0.0
    %373 = vmatpush2.msra.mxu0 0.0
    %374 = vmatprep.subr.mxu0 0.0
    %375 = vmatpush2.msra.mxu0 0.0
    %376 = vmatprep.subr.mxu0 0.0
    %377 = vmatpush2.msra.mxu0 0.0
    %378 = vmatprep.subr.mxu0 0.0
    %379 = vmatpush2.msra.mxu0 0.0
    %380 = vmatprep.mubr.f32.mxu0 0.0
    %381 = vmatmul.mubr.f32.gmra.mxu0 %v311
    %v382 = vpop.f32.mrf.mxu0
    %v383 = vadd.f32 %v303, %v382
    %v384 = vpop.f32.mrf.mxu0
    %385 = vmatprep.mubr.f32.mxu0 0.0
    %386 = vmatmul.mubr.f32.gmra.mxu0 %v314
    %v387 = vpop.f32.mrf.mxu0
    %v388 = vadd.f32 %v308, %v387
    %v389 = vpop.f32.mrf.mxu0
    %390 = vdwg.mxu0
    %v391 = vmax.f32 %v388, -5.0
    %v392 = vmin.f32 %v391, 2.0
    %v393 = vmul.f32 %v392, 1.442695
    %v394 = vpow.pop %v393
    %v395 = vld [vmem:[%s7] sm:$0xff]
    %v396 = vmul.f32 %v394, %v395
    %v397 = vadd.f32 %v383, %v396
    %v398 = vmul.f32 %v395, %v395
    %v399 = vmul.f32 %v398, -0.5
    %v400 = vsub.f32 %v399, %v392
    %v401 = vsub.f32 %v400, 0.9189385
    %v402 = vsub.f32 0.6931472, %v397
    %v403 = vmul.f32 %v397, -2.0
    %v404 = vmax.f32 %v403, 0.0
    %vm405 = vcmp.ne.f32.partialorder %v403, %v403
    %v406 = vadd.f32 %v403, 0.0
    %v407 = vand.u32 2147483647, %v403
    %v408 = vsub.f32 0.0, %v407
    %v409 = vmul.f32 %v408, 1.442695
    %v410 = vpow.pop %v409
    %v411 = vadd.f32 %v410, 1.0
    %v412 = vlog2.pop %v411
    %v413 = vmul.f32 %v412, 0.6931472
    %v414 = vmul.f32 -0.5, %v410
    %v415 = vadd.f32 %v414, 1.0
    %v416 = vmul.f32 %v415, %v410
    %v417 = vand.u32 2147483647, %v410
    %vm418 = vcmp.lt.f32.partialorder %v417, 0.0004427343
    %v419 = vsel %vm418, %v416, %v413
    %v420 = vadd.f32 %v404, %v419
    %v421 = vsel %vm405, %v406, %v420
    %v422 = vsub.f32 %v402, %v421
    %v423 = vmul.f32 %v422, 2.0
    %v424 = vsub.f32 %v401, %v423
    %vm425 = vcmask 15360
    %v426 = vsel %vm425, %v424, 0.0
    %v427 = vrot.slane %v426, 4
    %v428 = vadd.f32 %v426, %v427
    %v429 = vrot.slane %v428, 2
    %v430 = vadd.f32 %v428, %v429
    %v431 = vrot.slane %v430, 1
    %v432 = vadd.f32 %v430, %v431
    %vm433 = vcmask 8192
    %434 = vst.msk [vmem:[#allocation2] sm:$0x1] %vm433, %v432
    %v435 = vtanh.pop %v397
    %436 = vst.msk [vmem:[%s8] sm:$0xff] %vm425, %v435
    %437 = vst.msk [vmem:[%s10] sm:$0xff] %vm425, %v383
    %438 = vst.msk [vmem:[%s11] sm:$0xff] %vm425, %v394
    // Predicated region
    $region34: #{tpu_custom_call.1} parent=1 // pred_check
      _
    $region35: #{tpu_custom_call.1} parent=1 // pred_check_branch
      %440 = sbr.rel (0) target = $region37
    $region36: #{tpu_custom_call.1} parent=1 // pred_region
      _
    $region37: #{tpu_custom_call.1} parent=1 // pred_fallthru
      _
    // Predicated region
    $region38: #{tpu_custom_call.1} parent=1 // pred_check
      _
    $region39: #{tpu_custom_call.1} parent=1 // pred_check_branch
      %442 = sbr.rel (0) target = $region41
    $region40: #{tpu_custom_call.1} parent=1 // pred_region
      %s444 = ssub.s32 16, 16
      %445 = vsyncadd [#allocation3], %s444
      %s447 = sshll.u32 [#allocation2], 4
      %s448 = int_to_ptr.vmem [resolvable:$true] %s447
      %450 = dma.vmem_to_hbm [thread:$0]  %s448, 16, %s9, [#allocation3]
    $region41: #{tpu_custom_call.1} parent=1 // pred_fallthru
      _
    // Predicated region
    $region42: #{tpu_custom_call.1} parent=1 // pred_check
      _
    $region43: #{tpu_custom_call.1} parent=1 // pred_check_branch
      %452 = sbr.rel (0) target = $region45
    $region44: #{tpu_custom_call.1} parent=1 // pred_region
      _
    $region45: #{tpu_custom_call.1} parent=1 // pred_fallthru
      _
    // Predicated region
    $region46: #{tpu_custom_call.1} parent=1 // pred_check
      _
    $region47: #{tpu_custom_call.1} parent=1 // pred_check_branch
      %454 = sbr.rel (0) target = $region49
    $region48: #{tpu_custom_call.1} parent=1 // pred_region
      _
    $region49: #{tpu_custom_call.1} parent=1 // pred_fallthru
      _
    // Predicated region
    $region50: #{tpu_custom_call.1} parent=1 // pred_check
      _
    $region51: #{tpu_custom_call.1} parent=1 // pred_check_branch
      %456 = sbr.rel (0) target = $region53
    $region52: #{tpu_custom_call.1} parent=1 // pred_region
      _
    $region53: #{tpu_custom_call.1} parent=1 // pred_fallthru
      _
    // Predicated region
    $region54: #{tpu_custom_call.1} parent=1 // pred_check
      _
    $region55: #{tpu_custom_call.1} parent=1 // pred_check_branch
      %458 = sbr.rel (0) target = $region57
    $region56: #{tpu_custom_call.1} parent=1 // pred_region
      %459 = dma.done [#allocation3], 16
    $region57: #{tpu_custom_call.1} parent=1 // pred_fallthru
      _
    // Predicated region
    $region58: #{tpu_custom_call.1} parent=1 // pred_check
      _
    $region59: #{tpu_custom_call.1} parent=1 // pred_check_branch
      %461 = sbr.rel (0) target = $region61
    $region60: #{tpu_custom_call.1} parent=1 // pred_region
      _
    $region61: #{tpu_custom_call.1} parent=1 // pred_fallthru
      _
    // Predicated region
    $region62: #{tpu_custom_call.1} parent=1 // pred_check
      _
    $region63: #{tpu_custom_call.1} parent=1 // pred_check_branch
      %463 = sbr.rel (0) target = $region65
    $region64: #{tpu_custom_call.1} parent=1 // pred_region
      _
    $region65: #{tpu_custom_call.1} parent=1 // pred_fallthru
      _
    %464 = vsyncpa [#allocation3], 1

</llo_original>
